<compile_context>
chip_gen: v6e
topology: v6e:2x2x1
jax: 0.10.0
libtpu: 0.0.40
codegen_flags: <defaults>
</compile_context>

<pallas_src>
import numpy as np

import jax
import jax.numpy as jnp
from jax.experimental import pallas as pl
from jax.experimental.pallas import tpu as pltpu


_COMPUTE_DTYPE = jnp.bfloat16  # MXU operand dtype (f32 accumulation)


# ---------------------------------------------------------------------------
# Fused kernel: 3x (conv2x2 + bias + ReLU) for one image per grid step.
# ---------------------------------------------------------------------------
def _minigrid_cnn_kernel(x_ref, w1_ref, b1_ref, w2_ref, b2_ref, w3_ref, b3_ref,
                         o_ref):
    # x_ref:  (1, H, W*Cin)   one image, channel-fastest rows
    # wN_ref: (2, Win*Cin, Wout*Cout)  block-structured tap weights (bf16)
    # bN_ref: (1, Wout*Cout)  bias tiled along output columns (f32)
    # o_ref:  (1, 4, 256)     last layer activation, layout [y, x*64 + c]
    h = x_ref[0].astype(_COMPUTE_DTYPE)                      # (7, 21)
    acc = None
    for w_ref, b_ref in ((w1_ref, b1_ref), (w2_ref, b2_ref), (w3_ref, b3_ref)):
        ho = h.shape[0] - 1
        # Two accumulated MXU matmuls cover all 4 conv taps (dx folded into W).
        acc = jnp.dot(h[:ho, :], w_ref[0],
                      preferred_element_type=jnp.float32)
        acc = acc + jnp.dot(h[1:, :], w_ref[1],
                            preferred_element_type=jnp.float32)
        acc = jnp.maximum(acc + b_ref[...], 0.0)             # bias + ReLU (f32)
        h = acc.astype(_COMPUTE_DTYPE)                       # feed next layer
    o_ref[0] = acc.astype(o_ref.dtype)                       # (4, 256) lane-dense


# ---------------------------------------------------------------------------
# Parameter construction (same shapes/init style as the torch module)
# ---------------------------------------------------------------------------
def init_minigrid_cnn_params(key, obs_shape):
    c_in = obs_shape[0]
    dims = [(16, c_in), (32, 16), (64, 32)]
    params = []
    for i, (cout, cin) in enumerate(dims):
        kw, kb = jax.random.split(jax.random.fold_in(key, i))
        fan_in = cin * 2 * 2
        scale = 1.0 / jnp.sqrt(fan_in)
        w = jax.random.uniform(kw, (cout, cin, 2, 2), jnp.float32, -scale, scale)
        b = jax.random.uniform(kb, (cout,), jnp.float32, -scale, scale)
        params.append((w, b))
    return params


def pack_minigrid_cnn_params(params, obs_shape, compute_dtype=_COMPUTE_DTYPE):
    """One-time layout work (hoisted out of the forward path).

    For each layer builds Wbig[dy] of shape (Win*Cin, Wout*Cout) with
        Wbig[dy, (x+dx)*Cin + k, x*Cout + c] = W_torch[c, k, dy, dx]
    so that  out[y, x*Cout+c] = sum_dy  a[y+dy, :] @ Wbig[dy]  reproduces the
    2x2 VALID convolution on the (H, W*C) activation layout.  Bias is tiled to
    (1, Wout*Cout).  Weights are stored in bf16 for the MXU fast path.
    """
    _, _, w_in = obs_shape
    packed = []
    w_cur = w_in
    for (w, b) in params:
        w = np.asarray(w, dtype=np.float32)          # (Cout, Cin, 2, 2)
        b = np.asarray(b, dtype=np.float32)
        cout, cin = w.shape[0], w.shape[1]
        w_out = w_cur - 1
        big = np.zeros((2, w_cur * cin, w_out * cout), dtype=np.float32)
        for dy in range(2):
            for dx in range(2):
                tap = w[:, :, dy, dx].T              # (Cin, Cout)
                for x in range(w_out):
                    big[dy,
                        (x + dx) * cin:(x + dx + 1) * cin,
                        x * cout:(x + 1) * cout] = tap
        b_big = np.tile(b, w_out).reshape(1, w_out * cout)
        packed.append((jnp.asarray(big, dtype=compute_dtype),
                       jnp.asarray(b_big, dtype=jnp.float32)))
        w_cur = w_out
    return packed


# ---------------------------------------------------------------------------
# Forward pass
# ---------------------------------------------------------------------------
def minigrid_cnn_forward(packed_params, obs_nchw):
    """obs_nchw: (N, C, H, W) float32 -> (N, feature_size) float32."""
    n, c, h, w = obs_nchw.shape
    (w1, b1), (w2, b2), (w3, b3) = packed_params

    # (N, C, H, W) -> (N, H, W*C): one channel-fastest 2D slab per image.
    x = jnp.transpose(obs_nchw, (0, 2, 3, 1)).reshape(n, h, w * c)

    out_rows = h - 3                       # 4
    out_cols = int(w3.shape[-1])           # W_out3 * 64 = 256

    ms = (h - 1, h - 2, h - 3)
    flops = 2 * n * sum(2 * m * int(wb.shape[1]) * int(wb.shape[2])
                        for m, (wb, _) in zip(ms, packed_params))
    bytes_accessed = int(
        x.size * 4
        + sum(wb.size * wb.dtype.itemsize + bb.size * 4
              for wb, bb in packed_params)
        + n * out_rows * out_cols * 4)
    cost = pl.CostEstimate(flops=flops, transcendentals=0,
                           bytes_accessed=bytes_accessed)

    out = pl.pallas_call(
        _minigrid_cnn_kernel,
        out_shape=jax.ShapeDtypeStruct((n, out_rows, out_cols), jnp.float32),
        grid=(n,),
        in_specs=[
            pl.BlockSpec((1, h, w * c), lambda i: (i, 0, 0)),
            pl.BlockSpec(w1.shape, lambda i: (0, 0, 0)),
            pl.BlockSpec(b1.shape, lambda i: (0, 0)),
            pl.BlockSpec(w2.shape, lambda i: (0, 0, 0)),
            pl.BlockSpec(b2.shape, lambda i: (0, 0)),
            pl.BlockSpec(w3.shape, lambda i: (0, 0, 0)),
            pl.BlockSpec(b3.shape, lambda i: (0, 0)),
        ],
        out_specs=pl.BlockSpec((1, out_rows, out_cols), lambda i: (i, 0, 0)),
        compiler_params=pltpu.CompilerParams(
            dimension_semantics=("parallel",)),
        cost_estimate=cost,
    )(x, w1, b1, w2, b2, w3, b3)

    # Restore PyTorch's NCHW flatten order: out[n, y, x*64+c] -> n, c*16+y*4+x.
    # ~8 KB reshuffle, fused by XLA with surrounding ops.
    w_out_last = w - 3
    cout_last = out_cols // w_out_last
    feats = out.reshape(n, out_rows, w_out_last, cout_last)
    feats = jnp.transpose(feats, (0, 3, 1, 2)).reshape(n, -1)
    return feats


# ---------------------------------------------------------------------------
# Pure-JAX f32 reference (lax conv) for a sanity check
# ---------------------------------------------------------------------------
def _reference_forward(params, obs_nchw):
    x = obs_nchw
    for (w, b) in params:
        x = jax.lax.conv_general_dilated(
            x, w, window_strides=(1, 1), padding="VALID",
            dimension_numbers=("NCHW", "OIHW", "NCHW"))
        x = jnp.maximum(x + b.reshape(1, -1, 1, 1), 0.0)
    return x.reshape(x.shape[0], -1)


if __name__ == "__main__":
    # MiniGrid image observation: obs_shape = (3, 7, 7), batch = 2.
    obs_shape = (3, 7, 7)
    batch = 2

    key = jax.random.PRNGKey(0)
    k_params, k_obs = jax.random.split(key)

    params = init_minigrid_cnn_params(k_params, obs_shape)
    packed = pack_minigrid_cnn_params(params, obs_shape)
    obs = jax.random.normal(k_obs, (batch,) + obs_shape, dtype=jnp.float32)

    fwd = jax.jit(lambda o: minigrid_cnn_forward(packed, o))
    feats = jax.block_until_ready(fwd(obs))

    # feature_size check: (7-1-1-1)^2 * 64 = 16 * 64 = 1024
    assert feats.shape == (batch, 64 * 4 * 4), feats.shape

    ref = jax.block_until_ready(_reference_forward(params, obs))
    # bf16 MXU operands (f32 accumulation) vs. an all-f32 reference.
    max_err = float(jnp.max(jnp.abs(feats - ref)))
    assert jnp.allclose(feats, ref, atol=5e-2, rtol=5e-2), max_err

    print("KERNEL_OK")
</pallas_src>

<mosaic_0001>
module attributes {stable_mosaic.version = 11 : i64} {
  func.func @_minigrid_cnn_kernel(%arg0: i32, %arg1: memref<1x7x21xf32, #tpu.memory_space<vmem>>, %arg2: memref<2x21x96xbf16, #tpu.memory_space<vmem>>, %arg3: memref<1x96xf32, #tpu.memory_space<vmem>>, %arg4: memref<2x96x160xbf16, #tpu.memory_space<vmem>>, %arg5: memref<1x160xf32, #tpu.memory_space<vmem>>, %arg6: memref<2x160x256xbf16, #tpu.memory_space<vmem>>, %arg7: memref<1x256xf32, #tpu.memory_space<vmem>>, %arg8: memref<1x4x256xf32, #tpu.memory_space<vmem>>) attributes {dimension_semantics = [#tpu.dimension_semantics<parallel>], iteration_bounds = array<i64: 2>, scalar_prefetch = 0 : i64, scratch_operands = 0 : i64, tpu.core_type = #tpu.core_type<tc>, window_params = [{transform_indices = @transform_0, window_bounds = array<i64: 1, 7, 21>}, {pipeline_mode = #tpu.pipeline_mode<synchronous>, transform_indices = @transform_1, window_bounds = array<i64: 2, 21, 96>}, {pipeline_mode = #tpu.pipeline_mode<synchronous>, transform_indices = @transform_2, window_bounds = array<i64: 1, 96>}, {pipeline_mode = #tpu.pipeline_mode<synchronous>, transform_indices = @transform_3, window_bounds = array<i64: 2, 96, 160>}, {pipeline_mode = #tpu.pipeline_mode<synchronous>, transform_indices = @transform_4, window_bounds = array<i64: 1, 160>}, {pipeline_mode = #tpu.pipeline_mode<synchronous>, transform_indices = @transform_5, window_bounds = array<i64: 2, 160, 256>}, {pipeline_mode = #tpu.pipeline_mode<synchronous>, transform_indices = @transform_6, window_bounds = array<i64: 1, 256>}, {transform_indices = @transform_7, window_bounds = array<i64: 1, 4, 256>}]} {
    %c0 = arith.constant 0 : index
    %c0_0 = arith.constant 0 : index
    %c0_1 = arith.constant 0 : index
    %0 = vector.load %arg1[%c0, %c0_0, %c0_1] : memref<1x7x21xf32, #tpu.memory_space<vmem>>, vector<1x7x21xf32>
    %1 = vector.shape_cast %0 : vector<1x7x21xf32> to vector<7x21xf32>
    %2 = arith.truncf %1 : vector<7x21xf32> to vector<7x21xbf16>
    %3 = vector.extract_strided_slice %2 {offsets = [0, 0], sizes = [6, 21], strides = [1, 1]} : vector<7x21xbf16> to vector<6x21xbf16>
    %c0_2 = arith.constant 0 : index
    %c0_3 = arith.constant 0 : index
    %c0_4 = arith.constant 0 : index
    %4 = vector.load %arg2[%c0_2, %c0_3, %c0_4] : memref<2x21x96xbf16, #tpu.memory_space<vmem>>, vector<1x21x96xbf16>
    %5 = vector.shape_cast %4 : vector<1x21x96xbf16> to vector<21x96xbf16>
    %cst = arith.constant dense<0.000000e+00> : vector<6x96xf32>
    %6 = tpu.matmul %3, %5, %cst {dimension_numbers = #tpu.dot_dimension_numbers<[1], [0], [0], [1], [0, 0, 1, 1], [], []>} : vector<6x21xbf16>, vector<21x96xbf16>, vector<6x96xf32> -> vector<6x96xf32>
    %7 = vector.extract_strided_slice %2 {offsets = [1, 0], sizes = [6, 21], strides = [1, 1]} : vector<7x21xbf16> to vector<6x21xbf16>
    %c1 = arith.constant 1 : index
    %c0_5 = arith.constant 0 : index
    %c0_6 = arith.constant 0 : index
    %8 = vector.load %arg2[%c1, %c0_5, %c0_6] : memref<2x21x96xbf16, #tpu.memory_space<vmem>>, vector<1x21x96xbf16>
    %9 = vector.shape_cast %8 : vector<1x21x96xbf16> to vector<21x96xbf16>
    %cst_7 = arith.constant dense<0.000000e+00> : vector<6x96xf32>
    %10 = tpu.matmul %7, %9, %cst_7 {dimension_numbers = #tpu.dot_dimension_numbers<[1], [0], [0], [1], [0, 0, 1, 1], [], []>} : vector<6x21xbf16>, vector<21x96xbf16>, vector<6x96xf32> -> vector<6x96xf32>
    %11 = arith.addf %6, %10 : vector<6x96xf32>
    %c0_8 = arith.constant 0 : index
    %c0_9 = arith.constant 0 : index
    %12 = vector.load %arg3[%c0_8, %c0_9] : memref<1x96xf32, #tpu.memory_space<vmem>>, vector<1x96xf32>
    %13 = vector.broadcast %12 : vector<1x96xf32> to vector<6x96xf32>
    %14 = arith.addf %11, %13 : vector<6x96xf32>
    %cst_10 = arith.constant 0.000000e+00 : f32
    %15 = vector.broadcast %cst_10 : f32 to vector<6x96xf32>
    %16 = arith.maximumf %14, %15 : vector<6x96xf32>
    %17 = arith.truncf %16 : vector<6x96xf32> to vector<6x96xbf16>
    %18 = vector.extract_strided_slice %17 {offsets = [0, 0], sizes = [5, 96], strides = [1, 1]} : vector<6x96xbf16> to vector<5x96xbf16>
    %c0_11 = arith.constant 0 : index
    %c0_12 = arith.constant 0 : index
    %c0_13 = arith.constant 0 : index
    %19 = vector.load %arg4[%c0_11, %c0_12, %c0_13] : memref<2x96x160xbf16, #tpu.memory_space<vmem>>, vector<1x96x160xbf16>
    %20 = vector.shape_cast %19 : vector<1x96x160xbf16> to vector<96x160xbf16>
    %cst_14 = arith.constant dense<0.000000e+00> : vector<5x160xf32>
    %21 = tpu.matmul %18, %20, %cst_14 {dimension_numbers = #tpu.dot_dimension_numbers<[1], [0], [0], [1], [0, 0, 1, 1], [], []>} : vector<5x96xbf16>, vector<96x160xbf16>, vector<5x160xf32> -> vector<5x160xf32>
    %22 = vector.extract_strided_slice %17 {offsets = [1, 0], sizes = [5, 96], strides = [1, 1]} : vector<6x96xbf16> to vector<5x96xbf16>
    %c1_15 = arith.constant 1 : index
    %c0_16 = arith.constant 0 : index
    %c0_17 = arith.constant 0 : index
    %23 = vector.load %arg4[%c1_15, %c0_16, %c0_17] : memref<2x96x160xbf16, #tpu.memory_space<vmem>>, vector<1x96x160xbf16>
    %24 = vector.shape_cast %23 : vector<1x96x160xbf16> to vector<96x160xbf16>
    %cst_18 = arith.constant dense<0.000000e+00> : vector<5x160xf32>
    %25 = tpu.matmul %22, %24, %cst_18 {dimension_numbers = #tpu.dot_dimension_numbers<[1], [0], [0], [1], [0, 0, 1, 1], [], []>} : vector<5x96xbf16>, vector<96x160xbf16>, vector<5x160xf32> -> vector<5x160xf32>
    %26 = arith.addf %21, %25 : vector<5x160xf32>
    %c0_19 = arith.constant 0 : index
    %c0_20 = arith.constant 0 : index
    %27 = vector.load %arg5[%c0_19, %c0_20] : memref<1x160xf32, #tpu.memory_space<vmem>>, vector<1x160xf32>
    %28 = vector.broadcast %27 : vector<1x160xf32> to vector<5x160xf32>
    %29 = arith.addf %26, %28 : vector<5x160xf32>
    %cst_21 = arith.constant 0.000000e+00 : f32
    %30 = vector.broadcast %cst_21 : f32 to vector<5x160xf32>
    %31 = arith.maximumf %29, %30 : vector<5x160xf32>
    %32 = arith.truncf %31 : vector<5x160xf32> to vector<5x160xbf16>
    %33 = vector.extract_strided_slice %32 {offsets = [0, 0], sizes = [4, 160], strides = [1, 1]} : vector<5x160xbf16> to vector<4x160xbf16>
    %c0_22 = arith.constant 0 : index
    %c0_23 = arith.constant 0 : index
    %c0_24 = arith.constant 0 : index
    %34 = vector.load %arg6[%c0_22, %c0_23, %c0_24] : memref<2x160x256xbf16, #tpu.memory_space<vmem>>, vector<1x160x256xbf16>
    %35 = vector.shape_cast %34 : vector<1x160x256xbf16> to vector<160x256xbf16>
    %cst_25 = arith.constant dense<0.000000e+00> : vector<4x256xf32>
    %36 = tpu.matmul %33, %35, %cst_25 {dimension_numbers = #tpu.dot_dimension_numbers<[1], [0], [0], [1], [0, 0, 1, 1], [], []>} : vector<4x160xbf16>, vector<160x256xbf16>, vector<4x256xf32> -> vector<4x256xf32>
    %37 = vector.extract_strided_slice %32 {offsets = [1, 0], sizes = [4, 160], strides = [1, 1]} : vector<5x160xbf16> to vector<4x160xbf16>
    %c1_26 = arith.constant 1 : index
    %c0_27 = arith.constant 0 : index
    %c0_28 = arith.constant 0 : index
    %38 = vector.load %arg6[%c1_26, %c0_27, %c0_28] : memref<2x160x256xbf16, #tpu.memory_space<vmem>>, vector<1x160x256xbf16>
    %39 = vector.shape_cast %38 : vector<1x160x256xbf16> to vector<160x256xbf16>
    %cst_29 = arith.constant dense<0.000000e+00> : vector<4x256xf32>
    %40 = tpu.matmul %37, %39, %cst_29 {dimension_numbers = #tpu.dot_dimension_numbers<[1], [0], [0], [1], [0, 0, 1, 1], [], []>} : vector<4x160xbf16>, vector<160x256xbf16>, vector<4x256xf32> -> vector<4x256xf32>
    %41 = arith.addf %36, %40 : vector<4x256xf32>
    %c0_30 = arith.constant 0 : index
    %c0_31 = arith.constant 0 : index
    %42 = vector.load %arg7[%c0_30, %c0_31] : memref<1x256xf32, #tpu.memory_space<vmem>>, vector<1x256xf32>
    %43 = vector.broadcast %42 : vector<1x256xf32> to vector<4x256xf32>
    %44 = arith.addf %41, %43 : vector<4x256xf32>
    %cst_32 = arith.constant 0.000000e+00 : f32
    %45 = vector.broadcast %cst_32 : f32 to vector<4x256xf32>
    %46 = arith.maximumf %44, %45 : vector<4x256xf32>
    %c0_33 = arith.constant 0 : index
    %c0_34 = arith.constant 0 : index
    %c0_35 = arith.constant 0 : index
    %47 = vector.load %arg8[%c0_33, %c0_34, %c0_35] : memref<1x4x256xf32, #tpu.memory_space<vmem>>, vector<1x4x256xf32>
    %48 = vector.shape_cast %47 : vector<1x4x256xf32> to vector<4x256xf32>
    %49 = vector.shape_cast %46 : vector<4x256xf32> to vector<1x4x256xf32>
    tpu.vector_store %arg8[%c0_33, %c0_34, %c0_35], %49 {strides = array<i32>} : memref<1x4x256xf32, #tpu.memory_space<vmem>>, vector<1x4x256xf32>,
    return
  }
  func.func @transform_0(%arg0: i32) -> (i32, i32, i32) {
    %c0_i32 = arith.constant 0 : i32
    %c0_i32_0 = arith.constant 0 : i32
    %c0_i32_1 = arith.constant 0 : i32
    return %arg0, %c0_i32, %c0_i32_0 : i32, i32, i32
  }
  func.func @transform_1(%arg0: i32) -> (i32, i32, i32) {
    %c0_i32 = arith.constant 0 : i32
    %c0_i32_0 = arith.constant 0 : i32
    %c0_i32_1 = arith.constant 0 : i32
    %c0_i32_2 = arith.constant 0 : i32
    return %c0_i32, %c0_i32_0, %c0_i32_1 : i32, i32, i32
  }
  func.func @transform_2(%arg0: i32) -> (i32, i32) {
    %c0_i32 = arith.constant 0 : i32
    %c0_i32_0 = arith.constant 0 : i32
    %c0_i32_1 = arith.constant 0 : i32
    return %c0_i32, %c0_i32_0 : i32, i32
  }
  func.func @transform_3(%arg0: i32) -> (i32, i32, i32) {
    %c0_i32 = arith.constant 0 : i32
    %c0_i32_0 = arith.constant 0 : i32
    %c0_i32_1 = arith.constant 0 : i32
    %c0_i32_2 = arith.constant 0 : i32
    return %c0_i32, %c0_i32_0, %c0_i32_1 : i32, i32, i32
  }
  func.func @transform_4(%arg0: i32) -> (i32, i32) {
    %c0_i32 = arith.constant 0 : i32
    %c0_i32_0 = arith.constant 0 : i32
    %c0_i32_1 = arith.constant 0 : i32
    return %c0_i32, %c0_i32_0 : i32, i32
  }
  func.func @transform_5(%arg0: i32) -> (i32, i32, i32) {
    %c0_i32 = arith.constant 0 : i32
    %c0_i32_0 = arith.constant 0 : i32
    %c0_i32_1 = arith.constant 0 : i32
    %c0_i32_2 = arith.constant 0 : i32
    return %c0_i32, %c0_i32_0, %c0_i32_1 : i32, i32, i32
  }
  func.func @transform_6(%arg0: i32) -> (i32, i32) {
    %c0_i32 = arith.constant 0 : i32
    %c0_i32_0 = arith.constant 0 : i32
    %c0_i32_1 = arith.constant 0 : i32
    return %c0_i32, %c0_i32_0 : i32, i32
  }
  func.func @transform_7(%arg0: i32) -> (i32, i32, i32) {
    %c0_i32 = arith.constant 0 : i32
    %c0_i32_0 = arith.constant 0 : i32
    %c0_i32_1 = arith.constant 0 : i32
    return %arg0, %c0_i32, %c0_i32_0 : i32, i32, i32
  }
}

</mosaic_0001>

<llo_original>
// kernel: _lambda_.1
$region0: #{_lambda_.1}
  #allocation0 [shape = 'u32[]', space=smem, size = 0x4, offset = 0x4, fixed_abs, tag = 'smem constant byte address 0x4 - core index']
  #allocation1 [shape = 'u32[144,128]{1,0:T(1,128)}', space=vmem, size = 0x12000, scoped, tag = 'internal scratch']
  %s0 = inlined_call_operand.vmem [shape: f32[2,7,21], index: 0, kind: input, shape index: {}]
  %s1 = inlined_call_operand.vmem [shape: bf16[2,21,96], index: 1, kind: input, shape index: {}]
  %s2 = inlined_call_operand.vmem [shape: f32[1,96], index: 2, kind: input, shape index: {}]
  %s3 = inlined_call_operand.hbm [shape: bf16[2,96,160], index: 3, kind: input, shape index: {}]
  %s4 = inlined_call_operand.vmem [shape: f32[1,160], index: 4, kind: input, shape index: {}]
  %s5 = inlined_call_operand.hbm [shape: bf16[2,160,256], index: 5, kind: input, shape index: {}]
  %s6 = inlined_call_operand.vmem [shape: f32[1,256], index: 6, kind: input, shape index: {}]
  %s7 = inlined_call_operand.vmem [shape: f32[2,4,256], index: 7, kind: output, shape index: {}]
  %s8 = sld [smem:[#allocation0]]
  $region69: #{_lambda_.1} parent=0
    _
  %s10 = ssub.s32 1, %s8
  %s11 = scalar_select 0, %s10, %s8
  $region1: #{_lambda_.1} parent=0
    #allocation2 [shape = 'u8[98304]{0}', space=vmem, size = 0x18000, scoped, tag = 'input window, operand 3, single buffered']
    #allocation3 [shape = 's32[2]{0}', space=sflag, size = 0x8, scoped, tag = 'scoped memory for _lambda_.1']
    #allocation4 [shape = 'u8[163840]{0}', space=vmem, size = 0x28000, scoped, tag = 'input window, operand 5, single buffered']
    #allocation5 [shape = 's32[1]{0}', space=sflag, size = 0x4, scoped, tag = 'scoped memory for _lambda_.1']
    %12 = vsyncpa [#allocation3], 0
    %13 = vsyncpa [#allocation5], 0
    loop: start=0, step=1, limit=4
    $region2: #{_lambda_.1} parent=1 // loop_pre_header
      _
    $region3: #{_lambda_.1} parent=1 // loop_header
      %s15 = sphi 0, %s19
      %p16 = scmp.ge.s32.totalorder %s15, 4
      %s25 = sphi 0, %s27
      %s28 = sphi 0, %s25
      %s29 = sphi 0, %s28
      %s45 = sphi 0, %s29
      %s49 = sphi 0, %s49
      %s51 = sphi 0, %s49
      %s52 = sphi 0, %s51
      %s66 = sphi 0, %s52
      %s70 = sphi 0, %s70
      %s72 = sphi 0, %s70
      %s73 = sphi 0, %s72
      %s87 = sphi 0, %s73
      %s91 = sphi 0, %s91
      %s93 = sphi 0, %s91
      %s94 = sphi 0, %s93
      %s108 = sphi 0, %s94
      %s112 = sphi 0, %s112
      %s114 = sphi 0, %s112
      %s115 = sphi 0, %s114
      %s129 = sphi 0, %s115
      %s133 = sphi 0, %s133
      %s135 = sphi 0, %s133
      %s136 = sphi 0, %s135
      %s150 = sphi 0, %s136
      %s154 = sphi 0, %s154
      %s156 = sphi 0, %s154
      %s157 = sphi 0, %s156
      %s171 = sphi 0, %s157
      %s177 = sphi 0, %s179
      %s180 = sphi 0, %s177
      %s181 = sphi 0, %s180
      %s197 = sphi 0, %s181
    $region4: #{_lambda_.1} parent=1 // loop_header_branch
      %18 = sbr.rel (%p16) target = $region8
    $region5: #{_lambda_.1} parent=1 // loop_body
      %s20 = ssub.s32 %s15, 1
      %s21 = ssub.s32 %s15, 2
      %s22 = sadd.s32 %s15, 1
      %s23 = ssub.s32 %s15, %s22
      %p24 = scmp.eq.s32.totalorder %s23, 0
      %s26 = sadd.s32 %s25, 1
      %s27 = scalar_select %p24, %s25, %s26
      %p30 = pneg %p24
      %p31 = scmp.eq.s32.totalorder %s15, 1
      %p32 = por %p30, %p31
      %p33 = scmp.ne.s32.totalorder %s25, %s28
      %p34 = scmp.eq.s32.totalorder %s15, 0
      %p35 = por %p33, %p34
      %p36 = scmp.ne.s32.totalorder %s25, %s28
      %p37 = scmp.eq.s32.totalorder %s20, 1
      %p38 = por %p36, %p37
      %p39 = scmp.ne.s32.totalorder %s28, %s29
      %p40 = scmp.eq.s32.totalorder %s20, 0
      %p41 = por %p39, %p40
      %p42 = scmp.ne.s32.totalorder %s28, %s29
      %p43 = scmp.eq.s32.totalorder %s21, 1
      %p44 = por %p42, %p43
      %p46 = scmp.ne.s32.totalorder %s29, %s45
      %p47 = scmp.eq.s32.totalorder %s21, 0
      %p48 = por %p46, %p47
      %s50 = sadd.s32 %s49, 1
      %p53 = scmp.eq.s32.totalorder %s15, 1
      %p54 = scmp.ne.s32.totalorder %s49, %s51
      %p55 = scmp.eq.s32.totalorder %s15, 0
      %p56 = por %p54, %p55
      %p57 = scmp.ne.s32.totalorder %s49, %s51
      %p58 = scmp.eq.s32.totalorder %s20, 1
      %p59 = por %p57, %p58
      %p60 = scmp.ne.s32.totalorder %s51, %s52
      %p61 = scmp.eq.s32.totalorder %s20, 0
      %p62 = por %p60, %p61
      %p63 = scmp.ne.s32.totalorder %s51, %s52
      %p64 = scmp.eq.s32.totalorder %s21, 1
      %p65 = por %p63, %p64
      %p67 = scmp.ne.s32.totalorder %s52, %s66
      %p68 = scmp.eq.s32.totalorder %s21, 0
      %p69 = por %p67, %p68
      %s71 = sadd.s32 %s70, 1
      %p74 = scmp.eq.s32.totalorder %s15, 1
      %p75 = scmp.ne.s32.totalorder %s70, %s72
      %p76 = scmp.eq.s32.totalorder %s15, 0
      %p77 = por %p75, %p76
      %p78 = scmp.ne.s32.totalorder %s70, %s72
      %p79 = scmp.eq.s32.totalorder %s20, 1
      %p80 = por %p78, %p79
      %p81 = scmp.ne.s32.totalorder %s72, %s73
      %p82 = scmp.eq.s32.totalorder %s20, 0
      %p83 = por %p81, %p82
      %p84 = scmp.ne.s32.totalorder %s72, %s73
      %p85 = scmp.eq.s32.totalorder %s21, 1
      %p86 = por %p84, %p85
      %p88 = scmp.ne.s32.totalorder %s73, %s87
      %p89 = scmp.eq.s32.totalorder %s21, 0
      %p90 = por %p88, %p89
      %s92 = sadd.s32 %s91, 1
      %p95 = scmp.eq.s32.totalorder %s15, 1
      %p96 = scmp.ne.s32.totalorder %s91, %s93
      %p97 = scmp.eq.s32.totalorder %s15, 0
      %p98 = por %p96, %p97
      %p99 = scmp.ne.s32.totalorder %s91, %s93
      %p100 = scmp.eq.s32.totalorder %s20, 1
      %p101 = por %p99, %p100
      %p102 = scmp.ne.s32.totalorder %s93, %s94
      %p103 = scmp.eq.s32.totalorder %s20, 0
      %p104 = por %p102, %p103
      %p105 = scmp.ne.s32.totalorder %s93, %s94
      %p106 = scmp.eq.s32.totalorder %s21, 1
      %p107 = por %p105, %p106
      %p109 = scmp.ne.s32.totalorder %s94, %s108
      %p110 = scmp.eq.s32.totalorder %s21, 0
      %p111 = por %p109, %p110
      %s113 = sadd.s32 %s112, 1
      %p116 = scmp.eq.s32.totalorder %s15, 1
      %p117 = scmp.ne.s32.totalorder %s112, %s114
      %p118 = scmp.eq.s32.totalorder %s15, 0
      %p119 = por %p117, %p118
      %p120 = scmp.ne.s32.totalorder %s112, %s114
      %p121 = scmp.eq.s32.totalorder %s20, 1
      %p122 = por %p120, %p121
      %p123 = scmp.ne.s32.totalorder %s114, %s115
      %p124 = scmp.eq.s32.totalorder %s20, 0
      %p125 = por %p123, %p124
      %p126 = scmp.ne.s32.totalorder %s114, %s115
      %p127 = scmp.eq.s32.totalorder %s21, 1
      %p128 = por %p126, %p127
      %p130 = scmp.ne.s32.totalorder %s115, %s129
      %p131 = scmp.eq.s32.totalorder %s21, 0
      %p132 = por %p130, %p131
      %s134 = sadd.s32 %s133, 1
      %p137 = scmp.eq.s32.totalorder %s15, 1
      %p138 = scmp.ne.s32.totalorder %s133, %s135
      %p139 = scmp.eq.s32.totalorder %s15, 0
      %p140 = por %p138, %p139
      %p141 = scmp.ne.s32.totalorder %s133, %s135
      %p142 = scmp.eq.s32.totalorder %s20, 1
      %p143 = por %p141, %p142
      %p144 = scmp.ne.s32.totalorder %s135, %s136
      %p145 = scmp.eq.s32.totalorder %s20, 0
      %p146 = por %p144, %p145
      %p147 = scmp.ne.s32.totalorder %s135, %s136
      %p148 = scmp.eq.s32.totalorder %s21, 1
      %p149 = por %p147, %p148
      %p151 = scmp.ne.s32.totalorder %s136, %s150
      %p152 = scmp.eq.s32.totalorder %s21, 0
      %p153 = por %p151, %p152
      %s155 = sadd.s32 %s154, 1
      %p158 = scmp.eq.s32.totalorder %s15, 1
      %p159 = scmp.ne.s32.totalorder %s154, %s156
      %p160 = scmp.eq.s32.totalorder %s15, 0
      %p161 = por %p159, %p160
      %p162 = scmp.ne.s32.totalorder %s154, %s156
      %p163 = scmp.eq.s32.totalorder %s20, 1
      %p164 = por %p162, %p163
      %p165 = scmp.ne.s32.totalorder %s156, %s157
      %p166 = scmp.eq.s32.totalorder %s20, 0
      %p167 = por %p165, %p166
      %p168 = scmp.ne.s32.totalorder %s156, %s157
      %p169 = scmp.eq.s32.totalorder %s21, 1
      %p170 = por %p168, %p169
      %p172 = scmp.ne.s32.totalorder %s157, %s171
      %p173 = scmp.eq.s32.totalorder %s21, 0
      %p174 = por %p172, %p173
      %s175 = ssub.s32 %s15, %s22
      %p176 = scmp.eq.s32.totalorder %s175, 0
      %s178 = sadd.s32 %s177, 1
      %s179 = scalar_select %p176, %s177, %s178
      %p182 = pneg %p176
      %p183 = scmp.eq.s32.totalorder %s15, 1
      %p184 = por %p182, %p183
      %p185 = scmp.ne.s32.totalorder %s177, %s180
      %p186 = scmp.eq.s32.totalorder %s15, 0
      %p187 = por %p185, %p186
      %p188 = scmp.ne.s32.totalorder %s177, %s180
      %p189 = scmp.eq.s32.totalorder %s20, 1
      %p190 = por %p188, %p189
      %p191 = scmp.ne.s32.totalorder %s180, %s181
      %p192 = scmp.eq.s32.totalorder %s20, 0
      %p193 = por %p191, %p192
      %p194 = scmp.ne.s32.totalorder %s180, %s181
      %p195 = scmp.eq.s32.totalorder %s21, 1
      %p196 = por %p194, %p195
      %p198 = scmp.ne.s32.totalorder %s181, %s197
      %p199 = scmp.eq.s32.totalorder %s21, 0
      %p200 = por %p198, %p199
      %p201 = scmp.le.s32.totalorder 1, %s15
      %p202 = scmp.lt.s32.totalorder %s15, 3
      %p203 = pnand %p201, %p202
      %p204 = pneg %p203
      // Predicated region
      $region9: #{_lambda_.1} parent=5 // pred_check
        _
      $region10: #{_lambda_.1} parent=5 // pred_check_branch
        %206 = sbr.rel (%p203) target = $region12
      $region11: #{_lambda_.1} parent=5 // pred_region
        %s207 = ssub.s32 %s15, 1
        // Predicated region
        $region13: #{_lambda_.1} parent=11 // pred_check
          %p208 = pneg %p62
        $region14: #{_lambda_.1} parent=11 // pred_check_branch
          %210 = sbr.rel (%p208) target = $region16
        $region15: #{_lambda_.1} parent=11 // pred_region
          _
        $region16: #{_lambda_.1} parent=11 // pred_fallthru
          _
        // Predicated region
        $region17: #{_lambda_.1} parent=11 // pred_check
          %p211 = pneg %p83
        $region18: #{_lambda_.1} parent=11 // pred_check_branch
          %213 = sbr.rel (%p211) target = $region20
        $region19: #{_lambda_.1} parent=11 // pred_region
          _
        $region20: #{_lambda_.1} parent=11 // pred_fallthru
          _
        // Predicated region
        $region21: #{_lambda_.1} parent=11 // pred_check
          %p214 = pneg %p104
        $region22: #{_lambda_.1} parent=11 // pred_check_branch
          %216 = sbr.rel (%p214) target = $region24
        $region23: #{_lambda_.1} parent=11 // pred_region
          %s218 = ssub.s32 3072, 3072
          %219 = vsyncadd [#allocation3], %s218
          %s220 = sshll.u32 [#allocation2], 4
          %s221 = int_to_ptr.vmem [resolvable:$true] %s220
          %226 = dma.hbm_to_vmem [thread:$0]  %s3, 3072, %s221, [#allocation3], 128, 128, 8
        $region24: #{_lambda_.1} parent=11 // pred_fallthru
          _
        // Predicated region
        $region25: #{_lambda_.1} parent=11 // pred_check
          %p227 = pneg %p125
        $region26: #{_lambda_.1} parent=11 // pred_check_branch
          %229 = sbr.rel (%p227) target = $region28
        $region27: #{_lambda_.1} parent=11 // pred_region
          _
        $region28: #{_lambda_.1} parent=11 // pred_fallthru
          _
        // Predicated region
        $region29: #{_lambda_.1} parent=11 // pred_check
          %p230 = pneg %p146
        $region30: #{_lambda_.1} parent=11 // pred_check_branch
          %232 = sbr.rel (%p230) target = $region32
        $region31: #{_lambda_.1} parent=11 // pred_region
          %s234 = ssub.s32 5120, 5120
          %235 = vsyncadd [#allocation5], %s234
          %s236 = sshll.u32 [#allocation4], 4
          %s237 = int_to_ptr.vmem [resolvable:$true] %s236
          %242 = dma.hbm_to_vmem [thread:$0]  %s5, 5120, %s237, [#allocation5], 128, 128, 8
        $region32: #{_lambda_.1} parent=11 // pred_fallthru
          _
        // Predicated region
        $region33: #{_lambda_.1} parent=11 // pred_check
          %p243 = pneg %p167
        $region34: #{_lambda_.1} parent=11 // pred_check_branch
          %245 = sbr.rel (%p243) target = $region36
        $region35: #{_lambda_.1} parent=11 // pred_region
          _
        $region36: #{_lambda_.1} parent=11 // pred_fallthru
          _
      $region12: #{_lambda_.1} parent=5 // pred_fallthru
        _
      %p246 = scmp.lt.s32.totalorder %s15, 2
      // Predicated region
      $region37: #{_lambda_.1} parent=5 // pred_check
        %p247 = pneg %p246
      $region38: #{_lambda_.1} parent=5 // pred_check_branch
        %249 = sbr.rel (%p247) target = $region40
      $region39: #{_lambda_.1} parent=5 // pred_region
        // Predicated region
        $region41: #{_lambda_.1} parent=39 // pred_check
          %p250 = pneg %p35
        $region42: #{_lambda_.1} parent=39 // pred_check_branch
          %252 = sbr.rel (%p250) target = $region44
        $region43: #{_lambda_.1} parent=39 // pred_region
          %p253 = scmp.lt.s32.totalorder %s15, 1
          %s254 = scalar_select %p253, %s15, 1
          %s255 = smul.addr %s254, 8
          %s256 = scalar_lea.vmem %s0, %s255
        $region44: #{_lambda_.1} parent=39 // pred_fallthru
          _
      $region40: #{_lambda_.1} parent=5 // pred_fallthru
        _
      %p257 = scmp.le.s32.totalorder 1, %s15
      %p258 = scmp.lt.s32.totalorder %s15, 3
      %p259 = pnand %p257, %p258
      %p260 = pneg %p259
      // Predicated region
      $region45: #{_lambda_.1} parent=5 // pred_check
        _
      $region46: #{_lambda_.1} parent=5 // pred_check_branch
        %262 = sbr.rel (%p259) target = $region48
      $region47: #{_lambda_.1} parent=5 // pred_region
        %s263 = ssub.s32 %s15, 1
        // Predicated region
        $region49: #{_lambda_.1} parent=47 // pred_check
          %p264 = pneg %p104
        $region50: #{_lambda_.1} parent=47 // pred_check_branch
          %266 = sbr.rel (%p264) target = $region52
        $region51: #{_lambda_.1} parent=47 // pred_region
          %267 = dma.done [#allocation3], 3072
        $region52: #{_lambda_.1} parent=47 // pred_fallthru
          _
        // Predicated region
        $region53: #{_lambda_.1} parent=47 // pred_check
          %p268 = pneg %p146
        $region54: #{_lambda_.1} parent=47 // pred_check_branch
          %270 = sbr.rel (%p268) target = $region56
        $region55: #{_lambda_.1} parent=47 // pred_region
          %271 = dma.done [#allocation5], 5120
        $region56: #{_lambda_.1} parent=47 // pred_fallthru
          _
        %p272 = scmp.lt.s32.totalorder %s20, 1
        %s273 = scalar_select %p272, %s20, 1
        %s274 = smul.addr %s273, 8
        %s275 = scalar_lea.vmem %s0, %s274
        %p276 = pneg %p41
        %p277 = pneg %p38
        %p278 = pneg %p62
        %p279 = pneg %p59
        %p280 = pneg %p83
        %p281 = pneg %p80
        %p282 = pneg %p104
        %p283 = pneg %p101
        %p284 = pneg %p125
        %p285 = pneg %p122
        %p286 = pneg %p146
        %p287 = pneg %p143
        %p288 = pneg %p167
        %p289 = pneg %p164
        %p290 = pneg %p193
        %p291 = pneg %p190
        %p292 = scmp.lt.s32.totalorder %s20, 1
        %s293 = scalar_select %p292, %s20, 1
        %s294 = smul.addr %s293, 2
        %s295 = smul.addr %s294, 4
        %s296 = scalar_lea.vmem %s7, %s295
        %p297 = scmp.lt.s32.totalorder %s20, 1
        %s298 = scalar_select %p297, %s20, 1
        %s299 = smul.addr %s298, 8
        %s300 = scalar_lea.vmem %s0, %s299
        %p301 = scmp.lt.s32.totalorder %s20, 1
        %s302 = scalar_select %p301, %s20, 1
        %s303 = smul.addr %s302, 2
        %s304 = smul.addr %s303, 4
        %s305 = scalar_lea.vmem %s7, %s304
        %v307 = vld [vmem:[%s300] sm:$0x7f]
        %v308 = vpack.c.bf16 %v307, %v307
        %v309 = vld [vmem:[%s1] sm:$0xf]
        %v310 = vld [vmem:[%s1 + $0x4] sm:$0xf]
        %v311 = vld [vmem:[%s1 + $0x8] sm:$0x7]
        %s312 = scalar_lea.vmem %s1, 12
        %v313 = vld [vmem:[%s312] sm:$0xf]
        %v314 = vld [vmem:[%s312 + $0x4] sm:$0xf]
        %v315 = vld [vmem:[%s312 + $0x8] sm:$0x7]
        %v317 = vshrl.u32 %v308, 16
        %v319 = vshll.u32 %v308, 16
        %v321 = vrot.slane %v319, 1
        %v322 = vor.u32 %v317, %v321
        %v326 = vunpack.c.l.b16 %v313
        %v327 = vunpack.c.l.b16 %v314
        %v328 = vunpack.c.l.b16 %v315
        %v329 = vpack.c.b16 %v327, %v326
        %v330 = vpack.c.b16 %v328, %v328
        %vm332 = vcmask 171008
        %v334 = vsel %vm332, %v322, 0
        %vm336 = vcmask 1041408
        %vm337 = vcmask 1042432
        %v338 = vsel %vm336, 4294967295, 65535
        %v339 = vsel %vm337, %v338, 0
        %v341 = vand.u32 %v330, %v339
        %343 = vmatprep.subr.bf16.mxu0 0
        %344 = vmatpush1.bf16.msra.mxu0 0
        %345 = vmatprep.subr.bf16.mxu0 0
        %346 = vmatpush1.bf16.msra.mxu0 0
        %347 = vmatprep.subr.bf16.mxu0 0
        %348 = vmatpush1.bf16.msra.mxu0 0
        %349 = vmatprep.subr.bf16.mxu0 0
        %350 = vmatpush1.bf16.msra.mxu0 0
        %351 = vmatprep.subr.bf16.mxu0 0
        %352 = vmatpush1.bf16.msra.mxu0 0
        %353 = vmatprep.subr.bf16.mxu0 0
        %354 = vmatpush1.bf16.msra.mxu0 0
        %355 = vmatprep.subr.bf16.mxu0 0
        %356 = vmatpush1.bf16.msra.mxu0 %v341
        %357 = vmatprep.subr.bf16.mxu0 0
        %358 = vmatpush1.bf16.msra.mxu0 %v329
        %359 = vmatprep.subr.bf16.mxu0 0
        %360 = vmatpush2.bf16.msra.mxu0 0
        %361 = vmatprep.subr.bf16.mxu0 0
        %362 = vmatpush2.bf16.msra.mxu0 0
        %363 = vmatprep.subr.bf16.mxu0 0
        %364 = vmatpush2.bf16.msra.mxu0 0
        %365 = vmatprep.subr.bf16.mxu0 0
        %366 = vmatpush2.bf16.msra.mxu0 0
        %367 = vmatprep.subr.bf16.mxu0 0
        %368 = vmatpush2.bf16.msra.mxu0 0
        %369 = vmatprep.subr.bf16.mxu0 0
        %370 = vmatpush2.bf16.msra.mxu0 0
        %371 = vmatprep.subr.bf16.mxu0 0
        %372 = vmatpush2.bf16.msra.mxu0 0
        %373 = vmatprep.subr.bf16.mxu0 0
        %374 = vmatpush2.bf16.msra.mxu0 0
        %375 = vmatprep.mubr.bf16.mxu0 0
        %376 = vmatmul.mubr.bf16.gmra.mxu0 %v334
        %v377 = vpop.f32.mrf.mxu0
        %v378 = vadd.f32 0.0, %v377
        %v379 = vpop.f32.mrf.mxu0
        %v380 = vpop.f32.mrf.mxu0
        %v381 = vpop.f32.mrf.mxu0
        %382 = vdwg.mxu0
        %v386 = vunpack.c.l.b16 %v309
        %v387 = vunpack.c.l.b16 %v310
        %v388 = vunpack.c.l.b16 %v311
        %v389 = vpack.c.b16 %v387, %v386
        %v390 = vpack.c.b16 %v388, %v388
        %v392 = vsel %vm332, %v308, 0
        %v395 = vand.u32 %v390, %v339
        %397 = vmatprep.subr.bf16.mxu0 0
        %398 = vmatpush1.bf16.msra.mxu0 0
        %399 = vmatprep.subr.bf16.mxu0 0
        %400 = vmatpush1.bf16.msra.mxu0 0
        %401 = vmatprep.subr.bf16.mxu0 0
        %402 = vmatpush1.bf16.msra.mxu0 0
        %403 = vmatprep.subr.bf16.mxu0 0
        %404 = vmatpush1.bf16.msra.mxu0 0
        %405 = vmatprep.subr.bf16.mxu0 0
        %406 = vmatpush1.bf16.msra.mxu0 0
        %407 = vmatprep.subr.bf16.mxu0 0
        %408 = vmatpush1.bf16.msra.mxu0 0
        %409 = vmatprep.subr.bf16.mxu0 0
        %410 = vmatpush1.bf16.msra.mxu0 %v395
        %411 = vmatprep.subr.bf16.mxu0 0
        %412 = vmatpush1.bf16.msra.mxu0 %v389
        %413 = vmatprep.subr.bf16.mxu0 0
        %414 = vmatpush2.bf16.msra.mxu0 0
        %415 = vmatprep.subr.bf16.mxu0 0
        %416 = vmatpush2.bf16.msra.mxu0 0
        %417 = vmatprep.subr.bf16.mxu0 0
        %418 = vmatpush2.bf16.msra.mxu0 0
        %419 = vmatprep.subr.bf16.mxu0 0
        %420 = vmatpush2.bf16.msra.mxu0 0
        %421 = vmatprep.subr.bf16.mxu0 0
        %422 = vmatpush2.bf16.msra.mxu0 0
        %423 = vmatprep.subr.bf16.mxu0 0
        %424 = vmatpush2.bf16.msra.mxu0 0
        %425 = vmatprep.subr.bf16.mxu0 0
        %426 = vmatpush2.bf16.msra.mxu0 0
        %427 = vmatprep.subr.bf16.mxu0 0
        %428 = vmatpush2.bf16.msra.mxu0 0
        %429 = vmatprep.mubr.bf16.mxu0 0
        %430 = vmatmul.mubr.bf16.gmra.mxu0 %v392
        %v431 = vpop.f32.mrf.mxu0
        %v432 = vadd.f32 %v378, %v431
        %v433 = vpop.f32.mrf.mxu0
        %v434 = vpop.f32.mrf.mxu0
        %v435 = vpop.f32.mrf.mxu0
        %436 = vdwg.mxu0
        %v437 = vld [vmem:[%s2] sm:$0x1]
        %v439 = vlaneseq
        %v440 = vshrl.u32 %v439, 7
        %v441 = vsub.s32 0, %v440
        %v442 = vrot.slane %v437, %v441
        %v444 = vadd.f32 %v432, %v442
        %v445 = vmax.f32 %v444, 0.0
        %v446 = vpack.c.bf16 %v445, %v445
        %v447 = vld [vmem:[#allocation2] sm:$0xff]
        %v448 = vld [vmem:[#allocation2 + $0x8] sm:$0xff]
        %v449 = vld [vmem:[#allocation2 + $0x10] sm:$0xff]
        %v450 = vld [vmem:[#allocation2 + $0x18] sm:$0xff]
        %v451 = vld [vmem:[#allocation2 + $0x20] sm:$0xff]
        %v452 = vld [vmem:[#allocation2 + $0x28] sm:$0xff]
        %v453 = vld [vmem:[#allocation2 + $0x30] sm:$0xff]
        %v454 = vld [vmem:[#allocation2 + $0x38] sm:$0xff]
        %v455 = vld [vmem:[#allocation2 + $0x40] sm:$0xff]
        %v456 = vld [vmem:[#allocation2 + $0x48] sm:$0xff]
        %v457 = vld [vmem:[#allocation2 + $0x50] sm:$0xff]
        %v458 = vld [vmem:[#allocation2 + $0x58] sm:$0xff]
        %s459 = scalar_lea.vmem [#allocation2], 96
        %v460 = vld [vmem:[%s459] sm:$0xff]
        %v461 = vld [vmem:[%s459 + $0x8] sm:$0xff]
        %v462 = vld [vmem:[%s459 + $0x10] sm:$0xff]
        %v463 = vld [vmem:[%s459 + $0x18] sm:$0xff]
        %v464 = vld [vmem:[%s459 + $0x20] sm:$0xff]
        %v465 = vld [vmem:[%s459 + $0x28] sm:$0xff]
        %v466 = vld [vmem:[%s459 + $0x30] sm:$0xff]
        %v467 = vld [vmem:[%s459 + $0x38] sm:$0xff]
        %v468 = vld [vmem:[%s459 + $0x40] sm:$0xff]
        %v469 = vld [vmem:[%s459 + $0x48] sm:$0xff]
        %v470 = vld [vmem:[%s459 + $0x50] sm:$0xff]
        %v471 = vld [vmem:[%s459 + $0x58] sm:$0xff]
        %v473 = vshrl.u32 %v446, 16
        %v475 = vshll.u32 %v446, 16
        %v477 = vrot.slane %v475, 1
        %v478 = vor.u32 %v473, %v477
        %v491 = vunpack.c.l.b16 %v460
        %v492 = vunpack.c.h.b16 %v460
        %v493 = vunpack.c.l.b16 %v461
        %v494 = vunpack.c.h.b16 %v461
        %v495 = vunpack.c.l.b16 %v462
        %v496 = vunpack.c.h.b16 %v462
        %v497 = vunpack.c.l.b16 %v463
        %v498 = vunpack.c.h.b16 %v463
        %v499 = vunpack.c.l.b16 %v464
        %v500 = vunpack.c.h.b16 %v464
        %v501 = vunpack.c.l.b16 %v465
        %v502 = vunpack.c.h.b16 %v465
        %v503 = vunpack.c.l.b16 %v466
        %v504 = vunpack.c.h.b16 %v466
        %v505 = vunpack.c.l.b16 %v467
        %v506 = vunpack.c.h.b16 %v467
        %v507 = vunpack.c.l.b16 %v468
        %v508 = vunpack.c.h.b16 %v468
        %v509 = vunpack.c.l.b16 %v469
        %v510 = vunpack.c.h.b16 %v469
        %v511 = vunpack.c.l.b16 %v470
        %v512 = vunpack.c.h.b16 %v470
        %v513 = vunpack.c.l.b16 %v471
        %v514 = vunpack.c.h.b16 %v471
        %v515 = vpack.c.b16 %v493, %v491
        %v516 = vpack.c.b16 %v494, %v492
        %v517 = vpack.c.b16 %v497, %v495
        %v518 = vpack.c.b16 %v498, %v496
        %v519 = vpack.c.b16 %v501, %v499
        %v520 = vpack.c.b16 %v502, %v500
        %v521 = vpack.c.b16 %v505, %v503
        %v522 = vpack.c.b16 %v506, %v504
        %v523 = vpack.c.b16 %v509, %v507
        %v524 = vpack.c.b16 %v510, %v508
        %v525 = vpack.c.b16 %v513, %v511
        %v526 = vpack.c.b16 %v514, %v512
        %vm539 = vcmask 785408
        %v541 = vsel %vm539, %v478, 0
        %543 = vmatprep.subr.bf16.mxu0 0
        %544 = vmatpush1.bf16.msra.mxu0 0
        %545 = vmatprep.subr.bf16.mxu0 0
        %546 = vmatpush1.bf16.msra.mxu0 0
        %547 = vmatprep.subr.bf16.mxu0 %v526
        %548 = vmatpush1.bf16.msra.mxu0 %v525
        %549 = vmatprep.subr.bf16.mxu0 %v524
        %550 = vmatpush1.bf16.msra.mxu0 %v523
        %551 = vmatprep.subr.bf16.mxu0 %v522
        %552 = vmatpush1.bf16.msra.mxu0 %v521
        %553 = vmatprep.subr.bf16.mxu0 %v520
        %554 = vmatpush1.bf16.msra.mxu0 %v519
        %555 = vmatprep.subr.bf16.mxu0 %v518
        %556 = vmatpush1.bf16.msra.mxu0 %v517
        %557 = vmatprep.subr.bf16.mxu0 %v516
        %558 = vmatpush1.bf16.msra.mxu0 %v515
        %559 = vmatprep.subr.bf16.mxu0 0
        %560 = vmatpush2.bf16.msra.mxu0 0
        %561 = vmatprep.subr.bf16.mxu0 0
        %562 = vmatpush2.bf16.msra.mxu0 0
        %563 = vmatprep.subr.bf16.mxu0 0
        %564 = vmatpush2.bf16.msra.mxu0 0
        %565 = vmatprep.subr.bf16.mxu0 0
        %566 = vmatpush2.bf16.msra.mxu0 0
        %567 = vmatprep.subr.bf16.mxu0 0
        %568 = vmatpush2.bf16.msra.mxu0 0
        %569 = vmatprep.subr.bf16.mxu0 0
        %570 = vmatpush2.bf16.msra.mxu0 0
        %571 = vmatprep.subr.bf16.mxu0 0
        %572 = vmatpush2.bf16.msra.mxu0 0
        %573 = vmatprep.subr.bf16.mxu0 0
        %574 = vmatpush2.bf16.msra.mxu0 0
        %575 = vmatprep.mubr.bf16.mxu0 0
        %576 = vmatmul.mubr.bf16.gmra.mxu0 %v541
        %v577 = vpop.f32.mrf.mxu0
        %v578 = vadd.f32 0.0, %v577
        %v579 = vpop.f32.mrf.mxu0
        %v580 = vadd.f32 0.0, %v579
        %v581 = vpop.f32.mrf.mxu0
        %v582 = vpop.f32.mrf.mxu0
        %583 = vdwg.mxu0
        %v596 = vunpack.c.l.b16 %v447
        %v597 = vunpack.c.h.b16 %v447
        %v598 = vunpack.c.l.b16 %v448
        %v599 = vunpack.c.h.b16 %v448
        %v600 = vunpack.c.l.b16 %v449
        %v601 = vunpack.c.h.b16 %v449
        %v602 = vunpack.c.l.b16 %v450
        %v603 = vunpack.c.h.b16 %v450
        %v604 = vunpack.c.l.b16 %v451
        %v605 = vunpack.c.h.b16 %v451
        %v606 = vunpack.c.l.b16 %v452
        %v607 = vunpack.c.h.b16 %v452
        %v608 = vunpack.c.l.b16 %v453
        %v609 = vunpack.c.h.b16 %v453
        %v610 = vunpack.c.l.b16 %v454
        %v611 = vunpack.c.h.b16 %v454
        %v612 = vunpack.c.l.b16 %v455
        %v613 = vunpack.c.h.b16 %v455
        %v614 = vunpack.c.l.b16 %v456
        %v615 = vunpack.c.h.b16 %v456
        %v616 = vunpack.c.l.b16 %v457
        %v617 = vunpack.c.h.b16 %v457
        %v618 = vunpack.c.l.b16 %v458
        %v619 = vunpack.c.h.b16 %v458
        %v620 = vpack.c.b16 %v598, %v596
        %v621 = vpack.c.b16 %v599, %v597
        %v622 = vpack.c.b16 %v602, %v600
        %v623 = vpack.c.b16 %v603, %v601
        %v624 = vpack.c.b16 %v606, %v604
        %v625 = vpack.c.b16 %v607, %v605
        %v626 = vpack.c.b16 %v610, %v608
        %v627 = vpack.c.b16 %v611, %v609
        %v628 = vpack.c.b16 %v614, %v612
        %v629 = vpack.c.b16 %v615, %v613
        %v630 = vpack.c.b16 %v618, %v616
        %v631 = vpack.c.b16 %v619, %v617
        %v644 = vsel %vm539, %v446, 0
        %646 = vmatprep.subr.bf16.mxu0 0
        %647 = vmatpush1.bf16.msra.mxu0 0
        %648 = vmatprep.subr.bf16.mxu0 0
        %649 = vmatpush1.bf16.msra.mxu0 0
        %650 = vmatprep.subr.bf16.mxu0 %v631
        %651 = vmatpush1.bf16.msra.mxu0 %v630
        %652 = vmatprep.subr.bf16.mxu0 %v629
        %653 = vmatpush1.bf16.msra.mxu0 %v628
        %654 = vmatprep.subr.bf16.mxu0 %v627
        %655 = vmatpush1.bf16.msra.mxu0 %v626
        %656 = vmatprep.subr.bf16.mxu0 %v625
        %657 = vmatpush1.bf16.msra.mxu0 %v624
        %658 = vmatprep.subr.bf16.mxu0 %v623
        %659 = vmatpush1.bf16.msra.mxu0 %v622
        %660 = vmatprep.subr.bf16.mxu0 %v621
        %661 = vmatpush1.bf16.msra.mxu0 %v620
        %662 = vmatprep.subr.bf16.mxu0 0
        %663 = vmatpush2.bf16.msra.mxu0 0
        %664 = vmatprep.subr.bf16.mxu0 0
        %665 = vmatpush2.bf16.msra.mxu0 0
        %666 = vmatprep.subr.bf16.mxu0 0
        %667 = vmatpush2.bf16.msra.mxu0 0
        %668 = vmatprep.subr.bf16.mxu0 0
        %669 = vmatpush2.bf16.msra.mxu0 0
        %670 = vmatprep.subr.bf16.mxu0 0
        %671 = vmatpush2.bf16.msra.mxu0 0
        %672 = vmatprep.subr.bf16.mxu0 0
        %673 = vmatpush2.bf16.msra.mxu0 0
        %674 = vmatprep.subr.bf16.mxu0 0
        %675 = vmatpush2.bf16.msra.mxu0 0
        %676 = vmatprep.subr.bf16.mxu0 0
        %677 = vmatpush2.bf16.msra.mxu0 0
        %678 = vmatprep.mubr.bf16.mxu0 0
        %679 = vmatmul.mubr.bf16.gmra.mxu0 %v644
        %v680 = vpop.f32.mrf.mxu0
        %v681 = vadd.f32 %v578, %v680
        %v682 = vpop.f32.mrf.mxu0
        %v683 = vadd.f32 %v580, %v682
        %v684 = vpop.f32.mrf.mxu0
        %v685 = vpop.f32.mrf.mxu0
        %686 = vdwg.mxu0
        %v687 = vld [vmem:[%s4] sm:$0x3]
        %v689 = vlaneseq
        %v690 = vshrl.u32 %v689, 7
        %v691 = vsub.s32 0, %v690
        %v692 = vrot.slane %v687, %v691
        %v693 = vlaneseq
        %v694 = vshrl.u32 %v693, 7
        %v695 = vsub.s32 1, %v694
        %v696 = vrot.slane %v687, %v695
        %v699 = vadd.f32 %v681, %v692
        %v700 = vadd.f32 %v683, %v696
        %v701 = vmax.f32 %v699, 0.0
        %v702 = vmax.f32 %v700, 0.0
        %v703 = vpack.c.bf16 %v701, %v701
        %v704 = vpack.c.bf16 %v702, %v702
        %v705 = vld [vmem:[#allocation4] sm:$0xff]
        %v706 = vld [vmem:[#allocation4 + $0x8] sm:$0xff]
        %v707 = vld [vmem:[#allocation4 + $0x10] sm:$0xff]
        %v708 = vld [vmem:[#allocation4 + $0x18] sm:$0xff]
        %v709 = vld [vmem:[#allocation4 + $0x20] sm:$0xff]
        %v710 = vld [vmem:[#allocation4 + $0x28] sm:$0xff]
        %v711 = vld [vmem:[#allocation4 + $0x30] sm:$0xff]
        %v712 = vld [vmem:[#allocation4 + $0x38] sm:$0xff]
        %v713 = vld [vmem:[#allocation4 + $0x40] sm:$0xff]
        %v714 = vld [vmem:[#allocation4 + $0x48] sm:$0xff]
        %v715 = vld [vmem:[#allocation4 + $0x50] sm:$0xff]
        %v716 = vld [vmem:[#allocation4 + $0x58] sm:$0xff]
        %v717 = vld [vmem:[#allocation4 + $0x60] sm:$0xff]
        %v718 = vld [vmem:[#allocation4 + $0x68] sm:$0xff]
        %v719 = vld [vmem:[#allocation4 + $0x70] sm:$0xff]
        %v720 = vld [vmem:[#allocation4 + $0x78] sm:$0xff]
        %v721 = vld [vmem:[#allocation4 + $0x80] sm:$0xff]
        %v722 = vld [vmem:[#allocation4 + $0x88] sm:$0xff]
        %v723 = vld [vmem:[#allocation4 + $0x90] sm:$0xff]
        %v724 = vld [vmem:[#allocation4 + $0x98] sm:$0xff]
        %s725 = scalar_lea.vmem [#allocation4], 160
        %v726 = vld [vmem:[%s725] sm:$0xff]
        %v727 = vld [vmem:[%s725 + $0x8] sm:$0xff]
        %v728 = vld [vmem:[%s725 + $0x10] sm:$0xff]
        %v729 = vld [vmem:[%s725 + $0x18] sm:$0xff]
        %v730 = vld [vmem:[%s725 + $0x20] sm:$0xff]
        %v731 = vld [vmem:[%s725 + $0x28] sm:$0xff]
        %v732 = vld [vmem:[%s725 + $0x30] sm:$0xff]
        %v733 = vld [vmem:[%s725 + $0x38] sm:$0xff]
        %v734 = vld [vmem:[%s725 + $0x40] sm:$0xff]
        %v735 = vld [vmem:[%s725 + $0x48] sm:$0xff]
        %v736 = vld [vmem:[%s725 + $0x50] sm:$0xff]
        %v737 = vld [vmem:[%s725 + $0x58] sm:$0xff]
        %v738 = vld [vmem:[%s725 + $0x60] sm:$0xff]
        %v739 = vld [vmem:[%s725 + $0x68] sm:$0xff]
        %v740 = vld [vmem:[%s725 + $0x70] sm:$0xff]
        %v741 = vld [vmem:[%s725 + $0x78] sm:$0xff]
        %v742 = vld [vmem:[%s725 + $0x80] sm:$0xff]
        %v743 = vld [vmem:[%s725 + $0x88] sm:$0xff]
        %v744 = vld [vmem:[%s725 + $0x90] sm:$0xff]
        %v745 = vld [vmem:[%s725 + $0x98] sm:$0xff]
        %v747 = vshrl.u32 %v703, 16
        %v749 = vshll.u32 %v703, 16
        %v751 = vrot.slane %v749, 1
        %v752 = vor.u32 %v747, %v751
        %v754 = vshrl.u32 %v704, 16
        %v756 = vshll.u32 %v704, 16
        %v758 = vrot.slane %v756, 1
        %v759 = vor.u32 %v754, %v758
        %v781 = vunpack.c.l.b16 %v726
        %v782 = vunpack.c.h.b16 %v726
        %v783 = vunpack.c.l.b16 %v727
        %v784 = vunpack.c.h.b16 %v727
        %v785 = vunpack.c.l.b16 %v728
        %v786 = vunpack.c.h.b16 %v728
        %v787 = vunpack.c.l.b16 %v729
        %v788 = vunpack.c.h.b16 %v729
        %v789 = vunpack.c.l.b16 %v730
        %v790 = vunpack.c.h.b16 %v730
        %v791 = vunpack.c.l.b16 %v731
        %v792 = vunpack.c.h.b16 %v731
        %v793 = vunpack.c.l.b16 %v732
        %v794 = vunpack.c.h.b16 %v732
        %v795 = vunpack.c.l.b16 %v733
        %v796 = vunpack.c.h.b16 %v733
        %v797 = vunpack.c.l.b16 %v734
        %v798 = vunpack.c.h.b16 %v734
        %v799 = vunpack.c.l.b16 %v735
        %v800 = vunpack.c.h.b16 %v735
        %v801 = vunpack.c.l.b16 %v736
        %v802 = vunpack.c.h.b16 %v736
        %v803 = vunpack.c.l.b16 %v737
        %v804 = vunpack.c.h.b16 %v737
        %v805 = vunpack.c.l.b16 %v738
        %v806 = vunpack.c.h.b16 %v738
        %v807 = vunpack.c.l.b16 %v739
        %v808 = vunpack.c.h.b16 %v739
        %v809 = vunpack.c.l.b16 %v740
        %v810 = vunpack.c.h.b16 %v740
        %v811 = vunpack.c.l.b16 %v741
        %v812 = vunpack.c.h.b16 %v741
        %v813 = vunpack.c.l.b16 %v742
        %v814 = vunpack.c.h.b16 %v742
        %v815 = vunpack.c.l.b16 %v743
        %v816 = vunpack.c.h.b16 %v743
        %v817 = vunpack.c.l.b16 %v744
        %v818 = vunpack.c.h.b16 %v744
        %v819 = vunpack.c.l.b16 %v745
        %v820 = vunpack.c.h.b16 %v745
        %v821 = vpack.c.b16 %v783, %v781
        %v822 = vpack.c.b16 %v784, %v782
        %v823 = vpack.c.b16 %v787, %v785
        %v824 = vpack.c.b16 %v788, %v786
        %v825 = vpack.c.b16 %v791, %v789
        %v826 = vpack.c.b16 %v792, %v790
        %v827 = vpack.c.b16 %v795, %v793
        %v828 = vpack.c.b16 %v796, %v794
        %v829 = vpack.c.b16 %v799, %v797
        %v830 = vpack.c.b16 %v800, %v798
        %v831 = vpack.c.b16 %v803, %v801
        %v832 = vpack.c.b16 %v804, %v802
        %v833 = vpack.c.b16 %v807, %v805
        %v834 = vpack.c.b16 %v808, %v806
        %v835 = vpack.c.b16 %v811, %v809
        %v836 = vpack.c.b16 %v812, %v810
        %v837 = vpack.c.b16 %v815, %v813
        %v838 = vpack.c.b16 %v816, %v814
        %v839 = vpack.c.b16 %v819, %v817
        %v840 = vpack.c.b16 %v820, %v818
        %vm861 = vcmask 261120
        %v863 = vsel %vm861, %v759, 0
        %865 = vmatprep.subr.bf16.mxu0 %v836
        %866 = vmatpush1.bf16.msra.mxu0 %v835
        %867 = vmatprep.subr.bf16.mxu0 %v834
        %868 = vmatpush1.bf16.msra.mxu0 %v833
        %869 = vmatprep.subr.bf16.mxu0 %v832
        %870 = vmatpush1.bf16.msra.mxu0 %v831
        %871 = vmatprep.subr.bf16.mxu0 %v830
        %872 = vmatpush1.bf16.msra.mxu0 %v829
        %873 = vmatprep.subr.bf16.mxu0 %v828
        %874 = vmatpush1.bf16.msra.mxu0 %v827
        %875 = vmatprep.subr.bf16.mxu0 %v826
        %876 = vmatpush1.bf16.msra.mxu0 %v825
        %877 = vmatprep.subr.bf16.mxu0 %v824
        %878 = vmatpush1.bf16.msra.mxu0 %v823
        %879 = vmatprep.subr.bf16.mxu0 %v822
        %880 = vmatpush1.bf16.msra.mxu0 %v821
        %881 = vmatprep.subr.bf16.mxu0 0
        %882 = vmatpush2.bf16.msra.mxu0 0
        %883 = vmatprep.subr.bf16.mxu0 0
        %884 = vmatpush2.bf16.msra.mxu0 0
        %885 = vmatprep.subr.bf16.mxu0 0
        %886 = vmatpush2.bf16.msra.mxu0 0
        %887 = vmatprep.subr.bf16.mxu0 0
        %888 = vmatpush2.bf16.msra.mxu0 0
        %889 = vmatprep.subr.bf16.mxu0 0
        %890 = vmatpush2.bf16.msra.mxu0 0
        %891 = vmatprep.subr.bf16.mxu0 0
        %892 = vmatpush2.bf16.msra.mxu0 0
        %893 = vmatprep.subr.bf16.mxu0 %v840
        %894 = vmatpush2.bf16.msra.mxu0 %v839
        %895 = vmatprep.subr.bf16.mxu0 %v838
        %896 = vmatpush2.bf16.msra.mxu0 %v837
        %897 = vmatprep.mubr.bf16.mxu0 %v863
        %898 = vmatmul.mubr.bf16.gmra.mxu0 %v752
        %v899 = vpop.f32.mrf.mxu0
        %v900 = vadd.f32 0.0, %v899
        %v901 = vpop.f32.mrf.mxu0
        %v902 = vadd.f32 0.0, %v901
        %v903 = vpop.f32.mrf.mxu0
        %v904 = vpop.f32.mrf.mxu0
        %905 = vdwg.mxu0
        %v926 = vunpack.c.l.b16 %v705
        %v927 = vunpack.c.h.b16 %v705
        %v928 = vunpack.c.l.b16 %v706
        %v929 = vunpack.c.h.b16 %v706
        %v930 = vunpack.c.l.b16 %v707
        %v931 = vunpack.c.h.b16 %v707
        %v932 = vunpack.c.l.b16 %v708
        %v933 = vunpack.c.h.b16 %v708
        %v934 = vunpack.c.l.b16 %v709
        %v935 = vunpack.c.h.b16 %v709
        %v936 = vunpack.c.l.b16 %v710
        %v937 = vunpack.c.h.b16 %v710
        %v938 = vunpack.c.l.b16 %v711
        %v939 = vunpack.c.h.b16 %v711
        %v940 = vunpack.c.l.b16 %v712
        %v941 = vunpack.c.h.b16 %v712
        %v942 = vunpack.c.l.b16 %v713
        %v943 = vunpack.c.h.b16 %v713
        %v944 = vunpack.c.l.b16 %v714
        %v945 = vunpack.c.h.b16 %v714
        %v946 = vunpack.c.l.b16 %v715
        %v947 = vunpack.c.h.b16 %v715
        %v948 = vunpack.c.l.b16 %v716
        %v949 = vunpack.c.h.b16 %v716
        %v950 = vunpack.c.l.b16 %v717
        %v951 = vunpack.c.h.b16 %v717
        %v952 = vunpack.c.l.b16 %v718
        %v953 = vunpack.c.h.b16 %v718
        %v954 = vunpack.c.l.b16 %v719
        %v955 = vunpack.c.h.b16 %v719
        %v956 = vunpack.c.l.b16 %v720
        %v957 = vunpack.c.h.b16 %v720
        %v958 = vunpack.c.l.b16 %v721
        %v959 = vunpack.c.h.b16 %v721
        %v960 = vunpack.c.l.b16 %v722
        %v961 = vunpack.c.h.b16 %v722
        %v962 = vunpack.c.l.b16 %v723
        %v963 = vunpack.c.h.b16 %v723
        %v964 = vunpack.c.l.b16 %v724
        %v965 = vunpack.c.h.b16 %v724
        %v966 = vpack.c.b16 %v928, %v926
        %v967 = vpack.c.b16 %v929, %v927
        %v968 = vpack.c.b16 %v932, %v930
        %v969 = vpack.c.b16 %v933, %v931
        %v970 = vpack.c.b16 %v936, %v934
        %v971 = vpack.c.b16 %v937, %v935
        %v972 = vpack.c.b16 %v940, %v938
        %v973 = vpack.c.b16 %v941, %v939
        %v974 = vpack.c.b16 %v944, %v942
        %v975 = vpack.c.b16 %v945, %v943
        %v976 = vpack.c.b16 %v948, %v946
        %v977 = vpack.c.b16 %v949, %v947
        %v978 = vpack.c.b16 %v952, %v950
        %v979 = vpack.c.b16 %v953, %v951
        %v980 = vpack.c.b16 %v956, %v954
        %v981 = vpack.c.b16 %v957, %v955
        %v982 = vpack.c.b16 %v960, %v958
        %v983 = vpack.c.b16 %v961, %v959
        %v984 = vpack.c.b16 %v964, %v962
        %v985 = vpack.c.b16 %v965, %v963
        %v1006 = vsel %vm861, %v704, 0
        %1008 = vmatprep.subr.bf16.mxu0 %v981
        %1009 = vmatpush1.bf16.msra.mxu0 %v980
        %1010 = vmatprep.subr.bf16.mxu0 %v979
        %1011 = vmatpush1.bf16.msra.mxu0 %v978
        %1012 = vmatprep.subr.bf16.mxu0 %v977
        %1013 = vmatpush1.bf16.msra.mxu0 %v976
        %1014 = vmatprep.subr.bf16.mxu0 %v975
        %1015 = vmatpush1.bf16.msra.mxu0 %v974
        %1016 = vmatprep.subr.bf16.mxu0 %v973
        %1017 = vmatpush1.bf16.msra.mxu0 %v972
        %1018 = vmatprep.subr.bf16.mxu0 %v971
        %1019 = vmatpush1.bf16.msra.mxu0 %v970
        %1020 = vmatprep.subr.bf16.mxu0 %v969
        %1021 = vmatpush1.bf16.msra.mxu0 %v968
        %1022 = vmatprep.subr.bf16.mxu0 %v967
        %1023 = vmatpush1.bf16.msra.mxu0 %v966
        %1024 = vmatprep.subr.bf16.mxu0 0
        %1025 = vmatpush2.bf16.msra.mxu0 0
        %1026 = vmatprep.subr.bf16.mxu0 0
        %1027 = vmatpush2.bf16.msra.mxu0 0
        %1028 = vmatprep.subr.bf16.mxu0 0
        %1029 = vmatpush2.bf16.msra.mxu0 0
        %1030 = vmatprep.subr.bf16.mxu0 0
        %1031 = vmatpush2.bf16.msra.mxu0 0
        %1032 = vmatprep.subr.bf16.mxu0 0
        %1033 = vmatpush2.bf16.msra.mxu0 0
        %1034 = vmatprep.subr.bf16.mxu0 0
        %1035 = vmatpush2.bf16.msra.mxu0 0
        %1036 = vmatprep.subr.bf16.mxu0 %v985
        %1037 = vmatpush2.bf16.msra.mxu0 %v984
        %1038 = vmatprep.subr.bf16.mxu0 %v983
        %1039 = vmatpush2.bf16.msra.mxu0 %v982
        %1040 = vmatprep.mubr.bf16.mxu0 %v1006
        %1041 = vmatmul.mubr.bf16.gmra.mxu0 %v703
        %v1042 = vpop.f32.mrf.mxu0
        %v1043 = vadd.f32 %v900, %v1042
        %v1044 = vpop.f32.mrf.mxu0
        %v1045 = vadd.f32 %v902, %v1044
        %v1046 = vpop.f32.mrf.mxu0
        %v1047 = vpop.f32.mrf.mxu0
        %1048 = vdwg.mxu0
        %v1049 = vld [vmem:[%s6] sm:$0x3]
        %v1051 = vlaneseq
        %v1052 = vshrl.u32 %v1051, 7
        %v1053 = vsub.s32 0, %v1052
        %v1054 = vrot.slane %v1049, %v1053
        %v1055 = vlaneseq
        %v1056 = vshrl.u32 %v1055, 7
        %v1057 = vsub.s32 1, %v1056
        %v1058 = vrot.slane %v1049, %v1057
        %v1061 = vadd.f32 %v1043, %v1054
        %v1062 = vadd.f32 %v1045, %v1058
        %v1063 = vmax.f32 %v1061, 0.0
        %v1064 = vmax.f32 %v1062, 0.0
        %v1067 = vcombine.low %v1063, %v1064
        %1069 = vst [vmem:[%s305] sm:$0xff] %v1067
        %p1070 = scmp.lt.s32.totalorder %s20, 1
        %s1071 = scalar_select %p1070, %s20, 1
        %s1072 = smul.addr %s1071, 2
        %s1073 = smul.addr %s1072, 4
        %s1074 = scalar_lea.vmem %s7, %s1073
        // Predicated region
        $region57: #{_lambda_.1} parent=47 // pred_check
          %p1075 = pneg %p190
        $region58: #{_lambda_.1} parent=47 // pred_check_branch
          %1077 = sbr.rel (%p1075) target = $region60
        $region59: #{_lambda_.1} parent=47 // pred_region
          _
        $region60: #{_lambda_.1} parent=47 // pred_fallthru
          _
      $region48: #{_lambda_.1} parent=5 // pred_fallthru
        _
      %p1078 = scmp.le.s32.totalorder 2, %s15
      // Predicated region
      $region61: #{_lambda_.1} parent=5 // pred_check
        %p1079 = pneg %p1078
      $region62: #{_lambda_.1} parent=5 // pred_check_branch
        %1081 = sbr.rel (%p1079) target = $region64
      $region63: #{_lambda_.1} parent=5 // pred_region
        %s1082 = ssub.s32 %s15, 2
        // Predicated region
        $region65: #{_lambda_.1} parent=63 // pred_check
          %p1083 = pneg %p196
        $region66: #{_lambda_.1} parent=63 // pred_check_branch
          %1085 = sbr.rel (%p1083) target = $region68
        $region67: #{_lambda_.1} parent=63 // pred_region
          %p1086 = scmp.lt.s32.totalorder %s21, 1
          %s1087 = scalar_select %p1086, %s21, 1
          %s1088 = smul.addr %s1087, 2
          %s1089 = smul.addr %s1088, 4
          %s1090 = scalar_lea.vmem %s7, %s1089
        $region68: #{_lambda_.1} parent=63 // pred_fallthru
          _
      $region64: #{_lambda_.1} parent=5 // pred_fallthru
        _
    $region6: #{_lambda_.1} parent=1 // loop_footer
      %s19 = sadd.s32 1, %s15
    $region7: #{_lambda_.1} parent=1 // loop_footer_branch
      %14 = sbr.rel target = $region3
    $region8: #{_lambda_.1} parent=1 // loop_exit
      _
    %1091 = vsyncpa [#allocation3], 1
    %s1092 = scalar_lea.sflag [#allocation3], 1
    %1093 = vsyncpa %s1092, 1
    %1094 = vsyncpa [#allocation5], 1

</llo_original>
